<compile_context>
chip_gen: v6e
topology: v6e:2x2x1
jax: 0.10.0
libtpu: 0.0.40
codegen_flags: <defaults>
</compile_context>

<pallas_src>
import jax
import jax.numpy as jnp
from jax.experimental import pallas as pl
from jax.experimental.pallas import tpu as pltpu


def _round_up(x, m):
    return ((x + m - 1) // m) * m


def _gcn_kernel(a_ref, h_ref, indg_ref, o_ref, acc_ref):
    """acc (f32 scratch) += A_bf16 @ h_bf16; at the last k: o = acc * in_dg (cast)."""
    k = pl.program_id(2)

    @pl.when(k == 0)
    def _():
        acc_ref[...] = jnp.zeros_like(acc_ref)

    # bf16 x bf16 -> f32 accumulate on the MXU.
    acc_ref[...] += jnp.dot(a_ref[...], h_ref[...],
                            preferred_element_type=jnp.float32)

    @pl.when(k == pl.num_programs(2) - 1)
    def _():
        o_ref[...] = (acc_ref[...] * indg_ref[...]).astype(o_ref.dtype)


def gcn_layer(adj, node_f, out_d, in_dg, *, tn=512, td=256, tk=1024):
    """rst = in_dg * (adj @ (out_d * node_f)).

    adj:    [N, N] dense adjacency (adj[i, j] = 1 for edge j -> i)
    node_f: [N, D] node features
    out_d:  [N, 1] per-node out-degree scaling
    in_dg:  [N, 1] per-node in-degree scaling
    """
    N, D = node_f.shape
    assert adj.shape == (N, N)
    out_dtype = node_f.dtype

    # Fold the out_d prescale into the wrapper (single fused XLA op), then cast the
    # matmul operands to bf16.  in_dg (applied post-accumulation) stays in f32.
    h = (node_f.astype(jnp.float32) * out_d.astype(jnp.float32)).astype(jnp.bfloat16)
    a = adj.astype(jnp.bfloat16)
    in_dg = in_dg.astype(jnp.float32)

    # Clamp tiles to the (128-aligned) problem size, then pad to tile multiples.
    tn = min(tn, _round_up(N, 128))
    td = min(td, _round_up(D, 128))
    tk = min(tk, _round_up(N, 128))

    Nr = _round_up(N, tn)   # output / destination rows
    Nk = _round_up(N, tk)   # contraction (source nodes)
    Dp = _round_up(D, td)   # feature columns

    if (Nr, Nk) != (N, N):
        a = jnp.pad(a, ((0, Nr - N), (0, Nk - N)))
    if (Nk, Dp) != (N, D):
        h = jnp.pad(h, ((0, Nk - N), (0, Dp - D)))
    if Nr != N:
        in_dg = jnp.pad(in_dg, ((0, Nr - N), (0, 0)))

    grid = (Nr // tn, Dp // td, Nk // tk)

    out = pl.pallas_call(
        _gcn_kernel,
        out_shape=jax.ShapeDtypeStruct((Nr, Dp), out_dtype),
        grid_spec=pltpu.PrefetchScalarGridSpec(
            num_scalar_prefetch=0,
            grid=grid,
            in_specs=[
                pl.BlockSpec((tn, tk), lambda i, j, k: (i, k)),   # A tile (bf16)
                pl.BlockSpec((tk, td), lambda i, j, k: (k, j)),   # h tile (bf16)
                pl.BlockSpec((tn, 1), lambda i, j, k: (i, 0)),    # in_dg (dest nodes)
            ],
            out_specs=pl.BlockSpec((tn, td), lambda i, j, k: (i, j)),
            scratch_shapes=[pltpu.VMEM((tn, td), jnp.float32)],
        ),
        compiler_params=pltpu.CompilerParams(
            dimension_semantics=("parallel", "parallel", "arbitrary")),
    )(a, h, in_dg)

    if (Nr, Dp) != (N, D):
        out = out[:N, :D]
    return out


if __name__ == "__main__":
    # Small deterministic synthetic graph: N nodes, D features.
    N, D = 256, 128
    key = jax.random.PRNGKey(0)
    k_adj, k_feat = jax.random.split(key)

    # Deterministic random sparse-ish adjacency (dense representation).
    adj = (jax.random.uniform(k_adj, (N, N)) < 0.05).astype(jnp.float32)

    node_f = jax.random.normal(k_feat, (N, D), dtype=jnp.float32)

    # LightGCN-style degree normalizers: 1/sqrt(deg), clamped to avoid div-by-zero.
    out_deg = jnp.maximum(adj.sum(axis=0), 1.0)   # out-degree of node j = column sum
    in_deg = jnp.maximum(adj.sum(axis=1), 1.0)    # in-degree of node i = row sum
    out_d = (1.0 / jnp.sqrt(out_deg)).reshape(N, 1).astype(jnp.float32)
    in_dg = (1.0 / jnp.sqrt(in_deg)).reshape(N, 1).astype(jnp.float32)

    # Use small tiles here so the demo exercises a multi-step grid
    # (accumulation across k plus the init/finalize paths).
    rst = gcn_layer(adj, node_f, out_d, in_dg, tn=128, td=128, tk=128)
    rst = jax.block_until_ready(rst)

    # Pure-JAX f32 reference of the forward pass (kernel uses bf16 operands,
    # f32 accumulation -> allow bf16-level tolerance).
    ref = in_dg * (adj @ (out_d * node_f))

    assert rst.shape == (N, D)
    assert jnp.allclose(rst, ref, atol=2e-2, rtol=2e-2), "mismatch vs reference"
    print("KERNEL_OK")
</pallas_src>

<mosaic_0001>
module attributes {stable_mosaic.version = 11 : i64} {
  func.func @_gcn_kernel(%arg0: i32, %arg1: i32, %arg2: i32, %arg3: memref<128x128xbf16, #tpu.memory_space<vmem>>, %arg4: memref<128x128xbf16, #tpu.memory_space<vmem>>, %arg5: memref<128x1xf32, #tpu.memory_space<vmem>>, %arg6: memref<128x128xf32, #tpu.memory_space<vmem>>, %arg7: memref<128x128xf32, #tpu.memory_space<vmem>>) attributes {dimension_semantics = [#tpu.dimension_semantics<parallel>, #tpu.dimension_semantics<parallel>, #tpu.dimension_semantics<arbitrary>], iteration_bounds = array<i64: 2, 1, 2>, scalar_prefetch = 0 : i64, scratch_operands = 1 : i64, tpu.core_type = #tpu.core_type<tc>, window_params = [{transform_indices = @transform_0, window_bounds = array<i64: 128, 128>}, {transform_indices = @transform_1, window_bounds = array<i64: 128, 128>}, {transform_indices = @transform_2, window_bounds = array<i64: 128, 1>}, {transform_indices = @transform_3, window_bounds = array<i64: 128, 128>}]} {
    %c0_i32 = arith.constant 0 : i32
    %0 = arith.cmpi eq, %arg2, %c0_i32 : i32
    %1 = arith.extui %0 : i1 to i32
    %c0_i32_0 = arith.constant 0 : i32
    %2 = arith.cmpi ne, %1, %c0_i32_0 : i32
    scf.if %2 {
      %cst_9 = arith.constant 0.000000e+00 : f32
      %12 = vector.broadcast %cst_9 : f32 to vector<128x128xf32>
      %c0_10 = arith.constant 0 : index
      %c0_11 = arith.constant 0 : index
      %13 = vector.load %arg7[%c0_10, %c0_11] : memref<128x128xf32, #tpu.memory_space<vmem>>, vector<128x128xf32>
      tpu.vector_store %arg7[%c0_10, %c0_11], %12 {strides = array<i32>} : memref<128x128xf32, #tpu.memory_space<vmem>>, vector<128x128xf32>,
    } else {
    }
    %c0 = arith.constant 0 : index
    %c0_1 = arith.constant 0 : index
    %3 = vector.load %arg7[%c0, %c0_1] : memref<128x128xf32, #tpu.memory_space<vmem>>, vector<128x128xf32>
    %c0_2 = arith.constant 0 : index
    %c0_3 = arith.constant 0 : index
    %4 = vector.load %arg3[%c0_2, %c0_3] : memref<128x128xbf16, #tpu.memory_space<vmem>>, vector<128x128xbf16>
    %c0_4 = arith.constant 0 : index
    %c0_5 = arith.constant 0 : index
    %5 = vector.load %arg4[%c0_4, %c0_5] : memref<128x128xbf16, #tpu.memory_space<vmem>>, vector<128x128xbf16>
    %cst = arith.constant dense<0.000000e+00> : vector<128x128xf32>
    %6 = tpu.matmul %4, %5, %cst {dimension_numbers = #tpu.dot_dimension_numbers<[1], [0], [0], [1], [0, 0, 1, 1], [], []>} : vector<128x128xbf16>, vector<128x128xbf16>, vector<128x128xf32> -> vector<128x128xf32>
    %7 = arith.addf %3, %6 : vector<128x128xf32>
    %c0_6 = arith.constant 0 : index
    %c0_7 = arith.constant 0 : index
    %8 = vector.load %arg7[%c0_6, %c0_7] : memref<128x128xf32, #tpu.memory_space<vmem>>, vector<128x128xf32>
    tpu.vector_store %arg7[%c0_6, %c0_7], %7 {strides = array<i32>} : memref<128x128xf32, #tpu.memory_space<vmem>>, vector<128x128xf32>,
    %c1_i32 = arith.constant 1 : i32
    %9 = arith.cmpi eq, %arg2, %c1_i32 : i32
    %10 = arith.extui %9 : i1 to i32
    %c0_i32_8 = arith.constant 0 : i32
    %11 = arith.cmpi ne, %10, %c0_i32_8 : i32
    scf.if %11 {
      %c0_9 = arith.constant 0 : index
      %c0_10 = arith.constant 0 : index
      %12 = vector.load %arg7[%c0_9, %c0_10] : memref<128x128xf32, #tpu.memory_space<vmem>>, vector<128x128xf32>
      %c0_11 = arith.constant 0 : index
      %c0_12 = arith.constant 0 : index
      %13 = vector.load %arg5[%c0_11, %c0_12] : memref<128x1xf32, #tpu.memory_space<vmem>>, vector<128x1xf32>
      %14 = vector.broadcast %13 : vector<128x1xf32> to vector<128x128xf32>
      %15 = arith.mulf %12, %14 : vector<128x128xf32>
      %c0_13 = arith.constant 0 : index
      %c0_14 = arith.constant 0 : index
      %16 = vector.load %arg6[%c0_13, %c0_14] : memref<128x128xf32, #tpu.memory_space<vmem>>, vector<128x128xf32>
      tpu.vector_store %arg6[%c0_13, %c0_14], %15 {strides = array<i32>} : memref<128x128xf32, #tpu.memory_space<vmem>>, vector<128x128xf32>,
    } else {
    }
    return
  }
  func.func @transform_0(%arg0: i32, %arg1: i32, %arg2: i32) -> (i32, i32) {
    %c0_i32 = arith.constant 0 : i32
    return %arg0, %arg2 : i32, i32
  }
  func.func @transform_1(%arg0: i32, %arg1: i32, %arg2: i32) -> (i32, i32) {
    %c0_i32 = arith.constant 0 : i32
    return %arg2, %arg1 : i32, i32
  }
  func.func @transform_2(%arg0: i32, %arg1: i32, %arg2: i32) -> (i32, i32) {
    %c0_i32 = arith.constant 0 : i32
    %c0_i32_0 = arith.constant 0 : i32
    return %arg0, %c0_i32 : i32, i32
  }
  func.func @transform_3(%arg0: i32, %arg1: i32, %arg2: i32) -> (i32, i32) {
    %c0_i32 = arith.constant 0 : i32
    return %arg0, %arg1 : i32, i32
  }
}

</mosaic_0001>

<llo_original>
// kernel: tpu_custom_call.1
$region0: #{tpu_custom_call.1}
  #allocation0 [shape = 'u32[]', space=smem, size = 0x4, offset = 0x4, fixed_abs, tag = 'smem constant byte address 0x4 - core index']
  #allocation1 [shape = 'u32[144,128]{1,0:T(1,128)}', space=vmem, size = 0x12000, scoped, tag = 'internal scratch']
  #allocation2 [shape = 'f32[128,128]{1,0:T(8,128)}', space=vmem, size = 0x10000, scoped, tag = 'scratch operand']
  %s0 = inlined_call_operand.vmem [shape: bf16[256,256], index: 0, kind: input, shape index: {}]
  %s1 = inlined_call_operand.hbm [shape: bf16[256,128], index: 1, kind: input, shape index: {}]
  %s2 = inlined_call_operand.vmem [shape: f32[256,1], index: 2, kind: input, shape index: {}]
  %s3 = inlined_call_operand.hbm [shape: f32[256,128], index: 3, kind: output, shape index: {}]
  %s4 = sld [smem:[#allocation0]]
  $region98: #{tpu_custom_call.1} parent=0
    _
  %s6 = ssub.s32 1, %s4
  %s7 = scalar_select 0, %s6, %s4
  $region1: #{tpu_custom_call.1} parent=0
    #allocation3 [shape = 'u8[65536]{0}', space=vmem, size = 0x10000, scoped, tag = 'input window, operand 0']
    #allocation4 [shape = 'u8[65536]{0}', space=vmem, size = 0x10000, scoped, tag = 'input window, operand 1']
    #allocation5 [shape = 's32[2]{0}', space=sflag, size = 0x8, scoped, tag = 'scoped memory for tpu_custom_call.1']
    #allocation6 [shape = 's32[2]{0}', space=sflag, size = 0x8, scoped, tag = 'scoped memory for tpu_custom_call.1']
    #allocation7 [shape = 'u8[131072]{0}', space=vmem, size = 0x20000, scoped, tag = 'output window, operand 0']
    %8 = vsyncpa [#allocation5], 0
    %s9 = scalar_lea.sflag [#allocation5], 1
    %10 = vsyncpa %s9, 0
    %11 = vsyncpa [#allocation6], 0
    %s12 = scalar_lea.sflag [#allocation6], 1
    %13 = vsyncpa %s12, 0
    loop: start=0, step=1, limit=6
    $region2: #{tpu_custom_call.1} parent=1 // loop_pre_header
      _
    $region3: #{tpu_custom_call.1} parent=1 // loop_header
      %s15 = sphi 0, %s19
      %p16 = scmp.ge.s32.totalorder %s15, 6
      %s22 = sphi 0, %s41
      %s23 = sphi 0, %s37
      %s24 = sphi 0, %s33
      %s25 = sphi 0, %s22
      %s26 = sphi 0, %s23
      %s27 = sphi 0, %s24
      %s28 = sphi 0, %s25
      %s29 = sphi 0, %s26
      %s30 = sphi 0, %s27
      %s46 = sphi 0, %s48
      %s49 = sphi 0, %s46
      %s50 = sphi 0, %s49
      %s66 = sphi 0, %s50
      %s74 = sphi 0, %s76
      %s77 = sphi 0, %s74
      %s78 = sphi 0, %s77
      %s94 = sphi 0, %s78
      %s100 = sphi 0, %s102
      %s103 = sphi 0, %s100
      %s104 = sphi 0, %s103
      %s120 = sphi 0, %s104
      %s128 = sphi 0, %s130
      %s131 = sphi 0, %s128
      %s132 = sphi 0, %s131
      %s148 = sphi 0, %s132
    $region4: #{tpu_custom_call.1} parent=1 // loop_header_branch
      %18 = sbr.rel (%p16) target = $region8
    $region5: #{tpu_custom_call.1} parent=1 // loop_body
      %s20 = ssub.s32 %s15, 1
      %s21 = ssub.s32 %s15, 2
      %s31 = sadd.s32 1, %s24
      %p32 = scmp.ge.s32.totalorder %s31, 2
      %s33 = scalar_select %p32, 0, %s31
      %s34 = sadd.s32 1, %s23
      %s35 = scalar_select %p32, %s34, %s23
      %p36 = scmp.ge.s32.totalorder %s35, 1
      %s37 = scalar_select %p36, 0, %s35
      %s38 = sadd.s32 1, %s22
      %s39 = scalar_select %p36, %s38, %s22
      %p40 = scmp.ge.s32.totalorder %s39, 2
      %s41 = scalar_select %p40, 0, %s39
      %s42 = ssub.s32 %s22, %s41
      %s43 = ssub.s32 %s24, %s33
      %s44 = sor.u32 %s42, %s43
      %p45 = scmp.eq.s32.totalorder %s44, 0
      %s47 = sadd.s32 %s46, 1
      %s48 = scalar_select %p45, %s46, %s47
      %p51 = pneg %p45
      %p52 = scmp.eq.s32.totalorder %s15, 3
      %p53 = por %p51, %p52
      %p54 = scmp.ne.s32.totalorder %s46, %s49
      %p55 = scmp.eq.s32.totalorder %s15, 0
      %p56 = por %p54, %p55
      %p57 = scmp.ne.s32.totalorder %s46, %s49
      %p58 = scmp.eq.s32.totalorder %s20, 3
      %p59 = por %p57, %p58
      %p60 = scmp.ne.s32.totalorder %s49, %s50
      %p61 = scmp.eq.s32.totalorder %s20, 0
      %p62 = por %p60, %p61
      %p63 = scmp.ne.s32.totalorder %s49, %s50
      %p64 = scmp.eq.s32.totalorder %s21, 3
      %p65 = por %p63, %p64
      %p67 = scmp.ne.s32.totalorder %s50, %s66
      %p68 = scmp.eq.s32.totalorder %s21, 0
      %p69 = por %p67, %p68
      %s70 = ssub.s32 %s24, %s33
      %s71 = ssub.s32 %s23, %s37
      %s72 = sor.u32 %s70, %s71
      %p73 = scmp.eq.s32.totalorder %s72, 0
      %s75 = sadd.s32 %s74, 1
      %s76 = scalar_select %p73, %s74, %s75
      %p79 = pneg %p73
      %p80 = scmp.eq.s32.totalorder %s15, 3
      %p81 = por %p79, %p80
      %p82 = scmp.ne.s32.totalorder %s74, %s77
      %p83 = scmp.eq.s32.totalorder %s15, 0
      %p84 = por %p82, %p83
      %p85 = scmp.ne.s32.totalorder %s74, %s77
      %p86 = scmp.eq.s32.totalorder %s20, 3
      %p87 = por %p85, %p86
      %p88 = scmp.ne.s32.totalorder %s77, %s78
      %p89 = scmp.eq.s32.totalorder %s20, 0
      %p90 = por %p88, %p89
      %p91 = scmp.ne.s32.totalorder %s77, %s78
      %p92 = scmp.eq.s32.totalorder %s21, 3
      %p93 = por %p91, %p92
      %p95 = scmp.ne.s32.totalorder %s78, %s94
      %p96 = scmp.eq.s32.totalorder %s21, 0
      %p97 = por %p95, %p96
      %s98 = ssub.s32 %s22, %s41
      %p99 = scmp.eq.s32.totalorder %s98, 0
      %s101 = sadd.s32 %s100, 1
      %s102 = scalar_select %p99, %s100, %s101
      %p105 = pneg %p99
      %p106 = scmp.eq.s32.totalorder %s15, 3
      %p107 = por %p105, %p106
      %p108 = scmp.ne.s32.totalorder %s100, %s103
      %p109 = scmp.eq.s32.totalorder %s15, 0
      %p110 = por %p108, %p109
      %p111 = scmp.ne.s32.totalorder %s100, %s103
      %p112 = scmp.eq.s32.totalorder %s20, 3
      %p113 = por %p111, %p112
      %p114 = scmp.ne.s32.totalorder %s103, %s104
      %p115 = scmp.eq.s32.totalorder %s20, 0
      %p116 = por %p114, %p115
      %p117 = scmp.ne.s32.totalorder %s103, %s104
      %p118 = scmp.eq.s32.totalorder %s21, 3
      %p119 = por %p117, %p118
      %p121 = scmp.ne.s32.totalorder %s104, %s120
      %p122 = scmp.eq.s32.totalorder %s21, 0
      %p123 = por %p121, %p122
      %s124 = ssub.s32 %s22, %s41
      %s125 = ssub.s32 %s23, %s37
      %s126 = sor.u32 %s124, %s125
      %p127 = scmp.eq.s32.totalorder %s126, 0
      %s129 = sadd.s32 %s128, 1
      %s130 = scalar_select %p127, %s128, %s129
      %p133 = pneg %p127
      %p134 = scmp.eq.s32.totalorder %s15, 3
      %p135 = por %p133, %p134
      %p136 = scmp.ne.s32.totalorder %s128, %s131
      %p137 = scmp.eq.s32.totalorder %s15, 0
      %p138 = por %p136, %p137
      %p139 = scmp.ne.s32.totalorder %s128, %s131
      %p140 = scmp.eq.s32.totalorder %s20, 3
      %p141 = por %p139, %p140
      %p142 = scmp.ne.s32.totalorder %s131, %s132
      %p143 = scmp.eq.s32.totalorder %s20, 0
      %p144 = por %p142, %p143
      %p145 = scmp.ne.s32.totalorder %s131, %s132
      %p146 = scmp.eq.s32.totalorder %s21, 3
      %p147 = por %p145, %p146
      %p149 = scmp.ne.s32.totalorder %s132, %s148
      %p150 = scmp.eq.s32.totalorder %s21, 0
      %p151 = por %p149, %p150
      %p152 = scmp.le.s32.totalorder 1, %s15
      %p153 = scmp.lt.s32.totalorder %s15, 5
      %p154 = pnand %p152, %p153
      %p155 = pneg %p154
      // Predicated region
      $region9: #{tpu_custom_call.1} parent=5 // pred_check
        _
      $region10: #{tpu_custom_call.1} parent=5 // pred_check_branch
        %157 = sbr.rel (%p154) target = $region12
      $region11: #{tpu_custom_call.1} parent=5 // pred_region
        %s158 = ssub.s32 %s15, 1
      $region12: #{tpu_custom_call.1} parent=5 // pred_fallthru
        _
      %p159 = scmp.lt.s32.totalorder %s15, 4
      // Predicated region
      $region13: #{tpu_custom_call.1} parent=5 // pred_check
        %p160 = pneg %p159
      $region14: #{tpu_custom_call.1} parent=5 // pred_check_branch
        %162 = sbr.rel (%p160) target = $region16
      $region15: #{tpu_custom_call.1} parent=5 // pred_region
        // Predicated region
        $region17: #{tpu_custom_call.1} parent=15 // pred_check
          %p163 = pneg %p56
        $region18: #{tpu_custom_call.1} parent=15 // pred_check_branch
          %165 = sbr.rel (%p163) target = $region20
        $region19: #{tpu_custom_call.1} parent=15 // pred_region
          %s166 = sand.u32 %s46, 1
          %s167 = sand.u32 %s46, 1
          %s168 = smul.addr %s167, 64
          %s169 = scalar_lea.vmem [#allocation3], %s168
          %s170 = smul.u32 16, %s22
          %s171 = smul.addr %s170, 2
          %s172 = sadd.s32 %s24, %s171
          %s173 = smul.addr %s172, 4
          %s174 = scalar_lea.vmem %s0, %s173
          // Predicated region
          $region21: #{tpu_custom_call.1} parent=19 // pred_check
            _
          $region22: #{tpu_custom_call.1} parent=19 // pred_check_branch
            %176 = sbr.rel (0) target = $region24
          $region23: #{tpu_custom_call.1} parent=19 // pred_region
            // Predicated region
            $region25: #{tpu_custom_call.1} parent=23 // pred_check
              _
            $region26: #{tpu_custom_call.1} parent=23 // pred_check_branch
              %178 = sbr.rel target = $region28
            $region27: #{tpu_custom_call.1} parent=23 // pred_region
              // Predicated region
              $region40: #{tpu_custom_call.1} parent=27 // pred_check
                _
              $region41: #{tpu_custom_call.1} parent=27 // pred_check_branch
                %224 = sbr.rel (0) target = $region43
              $region42: #{tpu_custom_call.1} parent=27 // pred_region
                loop: start=0, step=1, limit=1
                $region44: #{tpu_custom_call.1} parent=42 // loop_pre_header
                  _
                $region45: #{tpu_custom_call.1} parent=42 // loop_header
                  %s226 = sphi 0, %s230
                  %p227 = scmp.ge.s32.totalorder %s226, 1
                  %s231 = sphi %s174, %s174
                  %s232 = sphi %s169, %s169
                $region46: #{tpu_custom_call.1} parent=42 // loop_header_branch
                  %229 = sbr.rel (%p227) target = $region50
                $region47: #{tpu_custom_call.1} parent=42 // loop_body
                  _
                $region48: #{tpu_custom_call.1} parent=42 // loop_footer
                  %s230 = sadd.s32 1, %s226
                $region49: #{tpu_custom_call.1} parent=42 // loop_footer_branch
                  %225 = sbr.rel target = $region45
                $region50: #{tpu_custom_call.1} parent=42 // loop_exit
                  _
                %s234 = ssub.s32 16, 1
                loop: start=0, step=1, limit=1
                $region51: #{tpu_custom_call.1} parent=42 // loop_pre_header
                  _
                $region52: #{tpu_custom_call.1} parent=42 // loop_header
                  %s236 = sphi 0, %s240
                  %p237 = scmp.ge.s32.totalorder %s236, 1
                  %s241 = sphi %s174, %s174
                  %s242 = sphi %s169, %s169
                $region53: #{tpu_custom_call.1} parent=42 // loop_header_branch
                  %239 = sbr.rel (%p237) target = $region57
                $region54: #{tpu_custom_call.1} parent=42 // loop_body
                  %v243 = vld [vmem:[%s241] sm:%s234]
                  %244 = vst [vmem:[%s242] sm:%s234] %v243
                  %v245 = vld [vmem:[%s241 + $0x8] sm:%s234]
                  %246 = vst [vmem:[%s242 + $0x4] sm:%s234] %v245
                  %v247 = vld [vmem:[%s241 + $0x10] sm:%s234]
                  %248 = vst [vmem:[%s242 + $0x8] sm:%s234] %v247
                  %v249 = vld [vmem:[%s241 + $0x18] sm:%s234]
                  %250 = vst [vmem:[%s242 + $0xc] sm:%s234] %v249
                  %v251 = vld [vmem:[%s241 + $0x20] sm:%s234]
                  %252 = vst [vmem:[%s242 + $0x10] sm:%s234] %v251
                  %v253 = vld [vmem:[%s241 + $0x28] sm:%s234]
                  %254 = vst [vmem:[%s242 + $0x14] sm:%s234] %v253
                  %v255 = vld [vmem:[%s241 + $0x30] sm:%s234]
                  %256 = vst [vmem:[%s242 + $0x18] sm:%s234] %v255
                  %v257 = vld [vmem:[%s241 + $0x38] sm:%s234]
                  %258 = vst [vmem:[%s242 + $0x1c] sm:%s234] %v257
                  %v259 = vld [vmem:[%s241 + $0x40] sm:%s234]
                  %260 = vst [vmem:[%s242 + $0x20] sm:%s234] %v259
                  %v261 = vld [vmem:[%s241 + $0x48] sm:%s234]
                  %262 = vst [vmem:[%s242 + $0x24] sm:%s234] %v261
                  %v263 = vld [vmem:[%s241 + $0x50] sm:%s234]
                  %264 = vst [vmem:[%s242 + $0x28] sm:%s234] %v263
                  %v265 = vld [vmem:[%s241 + $0x58] sm:%s234]
                  %266 = vst [vmem:[%s242 + $0x2c] sm:%s234] %v265
                  %v267 = vld [vmem:[%s241 + $0x60] sm:%s234]
                  %268 = vst [vmem:[%s242 + $0x30] sm:%s234] %v267
                  %v269 = vld [vmem:[%s241 + $0x68] sm:%s234]
                  %270 = vst [vmem:[%s242 + $0x34] sm:%s234] %v269
                  %v271 = vld [vmem:[%s241 + $0x70] sm:%s234]
                  %272 = vst [vmem:[%s242 + $0x38] sm:%s234] %v271
                  %v273 = vld [vmem:[%s241 + $0x78] sm:%s234]
                  %274 = vst [vmem:[%s242 + $0x3c] sm:%s234] %v273
                $region55: #{tpu_custom_call.1} parent=42 // loop_footer
                  %s240 = sadd.s32 1, %s236
                $region56: #{tpu_custom_call.1} parent=42 // loop_footer_branch
                  %235 = sbr.rel target = $region52
                $region57: #{tpu_custom_call.1} parent=42 // loop_exit
                  _
              $region43: #{tpu_custom_call.1} parent=27 // pred_fallthru
                _
            $region28: #{tpu_custom_call.1} parent=23 // pred_fallthru
              _
            // Predicated region
            $region29: #{tpu_custom_call.1} parent=23 // pred_check
              _
            $region30: #{tpu_custom_call.1} parent=23 // pred_check_branch
              %180 = sbr.rel (0) target = $region32
            $region31: #{tpu_custom_call.1} parent=23 // pred_region
              %s182 = ssub.s32 16, 1
              loop: start=0, step=1, limit=1
              $region33: #{tpu_custom_call.1} parent=31 // loop_pre_header
                _
              $region34: #{tpu_custom_call.1} parent=31 // loop_header
                %s184 = sphi 0, %s188
                %p185 = scmp.ge.s32.totalorder %s184, 1
                %s189 = sphi %s174, %s174
                %s190 = sphi %s169, %s169
              $region35: #{tpu_custom_call.1} parent=31 // loop_header_branch
                %187 = sbr.rel (%p185) target = $region39
              $region36: #{tpu_custom_call.1} parent=31 // loop_body
                %v191 = vld [vmem:[%s189] sm:%s182]
                %192 = vst [vmem:[%s190] sm:%s182] %v191
                %v193 = vld [vmem:[%s189 + $0x8] sm:%s182]
                %194 = vst [vmem:[%s190 + $0x4] sm:%s182] %v193
                %v195 = vld [vmem:[%s189 + $0x10] sm:%s182]
                %196 = vst [vmem:[%s190 + $0x8] sm:%s182] %v195
                %v197 = vld [vmem:[%s189 + $0x18] sm:%s182]
                %198 = vst [vmem:[%s190 + $0xc] sm:%s182] %v197
                %v199 = vld [vmem:[%s189 + $0x20] sm:%s182]
                %200 = vst [vmem:[%s190 + $0x10] sm:%s182] %v199
                %v201 = vld [vmem:[%s189 + $0x28] sm:%s182]
                %202 = vst [vmem:[%s190 + $0x14] sm:%s182] %v201
                %v203 = vld [vmem:[%s189 + $0x30] sm:%s182]
                %204 = vst [vmem:[%s190 + $0x18] sm:%s182] %v203
                %v205 = vld [vmem:[%s189 + $0x38] sm:%s182]
                %206 = vst [vmem:[%s190 + $0x1c] sm:%s182] %v205
                %v207 = vld [vmem:[%s189 + $0x40] sm:%s182]
                %208 = vst [vmem:[%s190 + $0x20] sm:%s182] %v207
                %v209 = vld [vmem:[%s189 + $0x48] sm:%s182]
                %210 = vst [vmem:[%s190 + $0x24] sm:%s182] %v209
                %v211 = vld [vmem:[%s189 + $0x50] sm:%s182]
                %212 = vst [vmem:[%s190 + $0x28] sm:%s182] %v211
                %v213 = vld [vmem:[%s189 + $0x58] sm:%s182]
                %214 = vst [vmem:[%s190 + $0x2c] sm:%s182] %v213
                %v215 = vld [vmem:[%s189 + $0x60] sm:%s182]
                %216 = vst [vmem:[%s190 + $0x30] sm:%s182] %v215
                %v217 = vld [vmem:[%s189 + $0x68] sm:%s182]
                %218 = vst [vmem:[%s190 + $0x34] sm:%s182] %v217
                %v219 = vld [vmem:[%s189 + $0x70] sm:%s182]
                %220 = vst [vmem:[%s190 + $0x38] sm:%s182] %v219
                %v221 = vld [vmem:[%s189 + $0x78] sm:%s182]
                %222 = vst [vmem:[%s190 + $0x3c] sm:%s182] %v221
              $region37: #{tpu_custom_call.1} parent=31 // loop_footer
                %s188 = sadd.s32 1, %s184
              $region38: #{tpu_custom_call.1} parent=31 // loop_footer_branch
                %183 = sbr.rel target = $region34
              $region39: #{tpu_custom_call.1} parent=31 // loop_exit
                _
            $region32: #{tpu_custom_call.1} parent=23 // pred_fallthru
              _
          $region24: #{tpu_custom_call.1} parent=19 // pred_fallthru
            _
          %275 = vnop
        $region20: #{tpu_custom_call.1} parent=15 // pred_fallthru
          _
        // Predicated region
        $region58: #{tpu_custom_call.1} parent=15 // pred_check
          %p276 = pneg %p84
        $region59: #{tpu_custom_call.1} parent=15 // pred_check_branch
          %278 = sbr.rel (%p276) target = $region61
        $region60: #{tpu_custom_call.1} parent=15 // pred_region
          %s279 = sand.u32 %s74, 1
          %s280 = scalar_lea.sflag [#allocation5], %s279
          %s281 = sand.u32 %s74, 1
          %s282 = smul.addr %s281, 64
          %s283 = scalar_lea.vmem [#allocation4], %s282
          %s284 = smul.u32 16, %s24
          %s286 = ssub.s32 1024, 1024
          %287 = vsyncadd %s280, %s286
          %s288 = sadd.s32 %s23, %s284
          %s289 = smul.addr %s288, 64
          %s290 = scalar_lea.hbm %s1, %s289
          %s291 = sshll.u32 %s283, 4
          %s292 = int_to_ptr.vmem [resolvable:$true] %s291
          %297 = dma.hbm_to_vmem [thread:$0]  %s290, 1024, %s292, %s280, 64, 64, 4
        $region61: #{tpu_custom_call.1} parent=15 // pred_fallthru
          _
        // Predicated region
        $region62: #{tpu_custom_call.1} parent=15 // pred_check
          %p298 = pneg %p110
        $region63: #{tpu_custom_call.1} parent=15 // pred_check_branch
          %300 = sbr.rel (%p298) target = $region65
        $region64: #{tpu_custom_call.1} parent=15 // pred_region
          %s301 = smul.u32 16, %s22
          %p302 = scmp.lt.s32.totalorder %s301, 31
          %s303 = scalar_select %p302, %s301, 31
          %s304 = smul.addr %s303, 8
          %s305 = scalar_lea.vmem %s2, %s304
          %s306 = smul.u32 16, %s22
        $region65: #{tpu_custom_call.1} parent=15 // pred_fallthru
          _
      $region16: #{tpu_custom_call.1} parent=5 // pred_fallthru
        _
      %p307 = scmp.le.s32.totalorder 1, %s15
      %p308 = scmp.lt.s32.totalorder %s15, 5
      %p309 = pnand %p307, %p308
      %p310 = pneg %p309
      // Predicated region
      $region66: #{tpu_custom_call.1} parent=5 // pred_check
        _
      $region67: #{tpu_custom_call.1} parent=5 // pred_check_branch
        %312 = sbr.rel (%p309) target = $region69
      $region68: #{tpu_custom_call.1} parent=5 // pred_region
        %s313 = ssub.s32 %s15, 1
        %s314 = sand.u32 %s49, 1
        %s315 = sand.u32 %s49, 1
        %s316 = smul.addr %s315, 64
        %s317 = scalar_lea.vmem [#allocation3], %s316
        // Predicated region
        $region70: #{tpu_custom_call.1} parent=68 // pred_check
          %p318 = pneg %p62
        $region71: #{tpu_custom_call.1} parent=68 // pred_check_branch
          %320 = sbr.rel (%p318) target = $region73
        $region72: #{tpu_custom_call.1} parent=68 // pred_region
          _
        $region73: #{tpu_custom_call.1} parent=68 // pred_fallthru
          _
        %s321 = sand.u32 %s77, 1
        %s322 = scalar_lea.sflag [#allocation5], %s321
        %s323 = sand.u32 %s77, 1
        %s324 = smul.addr %s323, 64
        %s325 = scalar_lea.vmem [#allocation4], %s324
        // Predicated region
        $region74: #{tpu_custom_call.1} parent=68 // pred_check
          %p326 = pneg %p90
        $region75: #{tpu_custom_call.1} parent=68 // pred_check_branch
          %328 = sbr.rel (%p326) target = $region77
        $region76: #{tpu_custom_call.1} parent=68 // pred_region
          %329 = dma.done %s322, 1024
        $region77: #{tpu_custom_call.1} parent=68 // pred_fallthru
          _
        %s330 = sand.u32 %s49, 1
        %s331 = sand.u32 %s49, 1
        %s332 = smul.addr %s331, 64
        %s333 = scalar_lea.vmem [#allocation3], %s332
        %p334 = pneg %p62
        %p335 = pneg %p59
        %s336 = sand.u32 %s77, 1
        %s337 = scalar_lea.sflag [#allocation5], %s336
        %s338 = sand.u32 %s77, 1
        %s339 = smul.addr %s338, 64
        %s340 = scalar_lea.vmem [#allocation4], %s339
        %p341 = pneg %p90
        %p342 = pneg %p87
        %s343 = smul.u32 16, %s25
        %p344 = scmp.lt.s32.totalorder %s343, 31
        %s345 = scalar_select %p344, %s343, 31
        %s346 = smul.addr %s345, 8
        %s347 = scalar_lea.vmem %s2, %s346
        %p348 = pneg %p116
        %p349 = pneg %p113
        %p350 = pneg %p144
        %p351 = pneg %p141
        %s352 = sand.u32 %s131, 1
        %s353 = scalar_lea.sflag [#allocation6], %s352
        %s354 = sand.u32 %s131, 1
        %s355 = smul.addr %s354, 128
        %s356 = scalar_lea.vmem [#allocation7], %s355
        %s357 = smul.u32 16, %s25
        %s358 = smul.u32 16, %s27
        %s359 = smul.u32 16, %s25
        %p360 = scmp.lt.s32.totalorder %s359, 31
        %s361 = scalar_select %p360, %s359, 31
        %s362 = smul.addr %s361, 8
        %s363 = scalar_lea.vmem %s2, %s362
        %s364 = smul.u32 16, %s25
        %s365 = smul.u32 16, %s25
        %p367 = scmp.eq.s32.totalorder %s27, 0
        // Predicated region
        $region78: #{tpu_custom_call.1} parent=68 // pred_check
          %p368 = pneg %p367
        $region79: #{tpu_custom_call.1} parent=68 // pred_check_branch
          %370 = sbr.rel (%p368) target = $region81
        $region80: #{tpu_custom_call.1} parent=68 // pred_region
          %371 = vst [vmem:[#allocation2] sm:$0xff] 0.0
          %372 = vst [vmem:[#allocation2 + $0x8] sm:$0xff] 0.0
          %373 = vst [vmem:[#allocation2 + $0x10] sm:$0xff] 0.0
          %374 = vst [vmem:[#allocation2 + $0x18] sm:$0xff] 0.0
          %375 = vst [vmem:[#allocation2 + $0x20] sm:$0xff] 0.0
          %376 = vst [vmem:[#allocation2 + $0x28] sm:$0xff] 0.0
          %377 = vst [vmem:[#allocation2 + $0x30] sm:$0xff] 0.0
          %378 = vst [vmem:[#allocation2 + $0x38] sm:$0xff] 0.0
          %379 = vst [vmem:[#allocation2 + $0x40] sm:$0xff] 0.0
          %380 = vst [vmem:[#allocation2 + $0x48] sm:$0xff] 0.0
          %381 = vst [vmem:[#allocation2 + $0x50] sm:$0xff] 0.0
          %382 = vst [vmem:[#allocation2 + $0x58] sm:$0xff] 0.0
          %383 = vst [vmem:[#allocation2 + $0x60] sm:$0xff] 0.0
          %384 = vst [vmem:[#allocation2 + $0x68] sm:$0xff] 0.0
          %385 = vst [vmem:[#allocation2 + $0x70] sm:$0xff] 0.0
          %386 = vst [vmem:[#allocation2 + $0x78] sm:$0xff] 0.0
        $region81: #{tpu_custom_call.1} parent=68 // pred_fallthru
          _
        %v387 = vld [vmem:[#allocation2] sm:$0xff]
        %v388 = vld [vmem:[#allocation2 + $0x8] sm:$0xff]
        %v389 = vld [vmem:[#allocation2 + $0x10] sm:$0xff]
        %v390 = vld [vmem:[#allocation2 + $0x18] sm:$0xff]
        %v391 = vld [vmem:[#allocation2 + $0x20] sm:$0xff]
        %v392 = vld [vmem:[#allocation2 + $0x28] sm:$0xff]
        %v393 = vld [vmem:[#allocation2 + $0x30] sm:$0xff]
        %v394 = vld [vmem:[#allocation2 + $0x38] sm:$0xff]
        %v395 = vld [vmem:[#allocation2 + $0x40] sm:$0xff]
        %v396 = vld [vmem:[#allocation2 + $0x48] sm:$0xff]
        %v397 = vld [vmem:[#allocation2 + $0x50] sm:$0xff]
        %v398 = vld [vmem:[#allocation2 + $0x58] sm:$0xff]
        %v399 = vld [vmem:[#allocation2 + $0x60] sm:$0xff]
        %v400 = vld [vmem:[#allocation2 + $0x68] sm:$0xff]
        %v401 = vld [vmem:[#allocation2 + $0x70] sm:$0xff]
        %v402 = vld [vmem:[#allocation2 + $0x78] sm:$0xff]
        %v403 = vld [vmem:[%s317] sm:$0xf]
        %v404 = vld [vmem:[%s317 + $0x4] sm:$0xf]
        %v405 = vld [vmem:[%s317 + $0x8] sm:$0xf]
        %v406 = vld [vmem:[%s317 + $0xc] sm:$0xf]
        %v407 = vld [vmem:[%s317 + $0x10] sm:$0xf]
        %v408 = vld [vmem:[%s317 + $0x14] sm:$0xf]
        %v409 = vld [vmem:[%s317 + $0x18] sm:$0xf]
        %v410 = vld [vmem:[%s317 + $0x1c] sm:$0xf]
        %v411 = vld [vmem:[%s317 + $0x20] sm:$0xf]
        %v412 = vld [vmem:[%s317 + $0x24] sm:$0xf]
        %v413 = vld [vmem:[%s317 + $0x28] sm:$0xf]
        %v414 = vld [vmem:[%s317 + $0x2c] sm:$0xf]
        %v415 = vld [vmem:[%s317 + $0x30] sm:$0xf]
        %v416 = vld [vmem:[%s317 + $0x34] sm:$0xf]
        %v417 = vld [vmem:[%s317 + $0x38] sm:$0xf]
        %v418 = vld [vmem:[%s317 + $0x3c] sm:$0xf]
        %v419 = vld [vmem:[%s325] sm:$0xf]
        %v420 = vld [vmem:[%s325 + $0x4] sm:$0xf]
        %v421 = vld [vmem:[%s325 + $0x8] sm:$0xf]
        %v422 = vld [vmem:[%s325 + $0xc] sm:$0xf]
        %v423 = vld [vmem:[%s325 + $0x10] sm:$0xf]
        %v424 = vld [vmem:[%s325 + $0x14] sm:$0xf]
        %v425 = vld [vmem:[%s325 + $0x18] sm:$0xf]
        %v426 = vld [vmem:[%s325 + $0x1c] sm:$0xf]
        %v427 = vld [vmem:[%s325 + $0x20] sm:$0xf]
        %v428 = vld [vmem:[%s325 + $0x24] sm:$0xf]
        %v429 = vld [vmem:[%s325 + $0x28] sm:$0xf]
        %v430 = vld [vmem:[%s325 + $0x2c] sm:$0xf]
        %v431 = vld [vmem:[%s325 + $0x30] sm:$0xf]
        %v432 = vld [vmem:[%s325 + $0x34] sm:$0xf]
        %v433 = vld [vmem:[%s325 + $0x38] sm:$0xf]
        %v434 = vld [vmem:[%s325 + $0x3c] sm:$0xf]
        %v451 = vunpack.c.l.b16 %v403
        %v452 = vunpack.c.l.b16 %v404
        %v453 = vunpack.c.l.b16 %v405
        %v454 = vunpack.c.l.b16 %v406
        %v455 = vunpack.c.l.b16 %v407
        %v456 = vunpack.c.l.b16 %v408
        %v457 = vunpack.c.l.b16 %v409
        %v458 = vunpack.c.l.b16 %v410
        %v459 = vunpack.c.l.b16 %v411
        %v460 = vunpack.c.l.b16 %v412
        %v461 = vunpack.c.l.b16 %v413
        %v462 = vunpack.c.l.b16 %v414
        %v463 = vunpack.c.l.b16 %v415
        %v464 = vunpack.c.l.b16 %v416
        %v465 = vunpack.c.l.b16 %v417
        %v466 = vunpack.c.l.b16 %v418
        %v467 = vpack.c.b16 %v452, %v451
        %v468 = vpack.c.b16 %v454, %v453
        %v469 = vpack.c.b16 %v456, %v455
        %v470 = vpack.c.b16 %v458, %v457
        %v471 = vpack.c.b16 %v460, %v459
        %v472 = vpack.c.b16 %v462, %v461
        %v473 = vpack.c.b16 %v464, %v463
        %v474 = vpack.c.b16 %v466, %v465
        %v499 = vunpack.c.l.b16 %v419
        %v500 = vunpack.c.l.b16 %v420
        %v501 = vunpack.c.l.b16 %v421
        %v502 = vunpack.c.l.b16 %v422
        %v503 = vunpack.c.l.b16 %v423
        %v504 = vunpack.c.l.b16 %v424
        %v505 = vunpack.c.l.b16 %v425
        %v506 = vunpack.c.l.b16 %v426
        %v507 = vunpack.c.l.b16 %v427
        %v508 = vunpack.c.l.b16 %v428
        %v509 = vunpack.c.l.b16 %v429
        %v510 = vunpack.c.l.b16 %v430
        %v511 = vunpack.c.l.b16 %v431
        %v512 = vunpack.c.l.b16 %v432
        %v513 = vunpack.c.l.b16 %v433
        %v514 = vunpack.c.l.b16 %v434
        %v515 = vpack.c.b16 %v500, %v499
        %v516 = vpack.c.b16 %v502, %v501
        %v517 = vpack.c.b16 %v504, %v503
        %v518 = vpack.c.b16 %v506, %v505
        %v519 = vpack.c.b16 %v508, %v507
        %v520 = vpack.c.b16 %v510, %v509
        %v521 = vpack.c.b16 %v512, %v511
        %v522 = vpack.c.b16 %v514, %v513
        %531 = vmatprep.subr.bf16.mxu0 0
        %532 = vmatpush1.bf16.msra.mxu0 %v522
        %533 = vmatprep.subr.bf16.mxu0 0
        %534 = vmatpush1.bf16.msra.mxu0 %v521
        %535 = vmatprep.subr.bf16.mxu0 0
        %536 = vmatpush1.bf16.msra.mxu0 %v520
        %537 = vmatprep.subr.bf16.mxu0 0
        %538 = vmatpush1.bf16.msra.mxu0 %v519
        %539 = vmatprep.subr.bf16.mxu0 0
        %540 = vmatpush1.bf16.msra.mxu0 %v518
        %541 = vmatprep.subr.bf16.mxu0 0
        %542 = vmatpush1.bf16.msra.mxu0 %v517
        %543 = vmatprep.subr.bf16.mxu0 0
        %544 = vmatpush1.bf16.msra.mxu0 %v516
        %545 = vmatprep.subr.bf16.mxu0 0
        %546 = vmatpush1.bf16.msra.mxu0 %v515
        %547 = vmatprep.subr.bf16.mxu0 0
        %548 = vmatpush2.bf16.msra.mxu0 0
        %549 = vmatprep.subr.bf16.mxu0 0
        %550 = vmatpush2.bf16.msra.mxu0 0
        %551 = vmatprep.subr.bf16.mxu0 0
        %552 = vmatpush2.bf16.msra.mxu0 0
        %553 = vmatprep.subr.bf16.mxu0 0
        %554 = vmatpush2.bf16.msra.mxu0 0
        %555 = vmatprep.subr.bf16.mxu0 0
        %556 = vmatpush2.bf16.msra.mxu0 0
        %557 = vmatprep.subr.bf16.mxu0 0
        %558 = vmatpush2.bf16.msra.mxu0 0
        %559 = vmatprep.subr.bf16.mxu0 0
        %560 = vmatpush2.bf16.msra.mxu0 0
        %561 = vmatprep.subr.bf16.mxu0 0
        %562 = vmatpush2.bf16.msra.mxu0 0
        %563 = vmatprep.mubr.bf16.mxu0 0
        %564 = vmatmul.mubr.bf16.gmra.mxu0 %v467
        %v565 = vpop.f32.mrf.mxu0
        %v566 = vadd.f32 0.0, %v565
        %v567 = vpop.f32.mrf.mxu0
        %v568 = vpop.f32.mrf.mxu0
        %v569 = vadd.f32 0.0, %v568
        %v570 = vpop.f32.mrf.mxu0
        %571 = vmatprep.mubr.bf16.mxu0 0
        %572 = vmatmul.mubr.bf16.gmra.mxu0 %v468
        %v573 = vpop.f32.mrf.mxu0
        %v574 = vadd.f32 0.0, %v573
        %v575 = vpop.f32.mrf.mxu0
        %v576 = vpop.f32.mrf.mxu0
        %v577 = vadd.f32 0.0, %v576
        %v578 = vpop.f32.mrf.mxu0
        %579 = vmatprep.mubr.bf16.mxu0 0
        %580 = vmatmul.mubr.bf16.gmra.mxu0 %v469
        %v581 = vpop.f32.mrf.mxu0
        %v582 = vadd.f32 0.0, %v581
        %v583 = vpop.f32.mrf.mxu0
        %v584 = vpop.f32.mrf.mxu0
        %v585 = vadd.f32 0.0, %v584
        %v586 = vpop.f32.mrf.mxu0
        %587 = vmatprep.mubr.bf16.mxu0 0
        %588 = vmatmul.mubr.bf16.gmra.mxu0 %v470
        %v589 = vpop.f32.mrf.mxu0
        %v590 = vadd.f32 0.0, %v589
        %v591 = vpop.f32.mrf.mxu0
        %v592 = vpop.f32.mrf.mxu0
        %v593 = vadd.f32 0.0, %v592
        %v594 = vpop.f32.mrf.mxu0
        %595 = vmatprep.mubr.bf16.mxu0 0
        %596 = vmatmul.mubr.bf16.gmra.mxu0 %v471
        %v597 = vpop.f32.mrf.mxu0
        %v598 = vadd.f32 0.0, %v597
        %v599 = vpop.f32.mrf.mxu0
        %v600 = vpop.f32.mrf.mxu0
        %v601 = vadd.f32 0.0, %v600
        %v602 = vpop.f32.mrf.mxu0
        %603 = vmatprep.mubr.bf16.mxu0 0
        %604 = vmatmul.mubr.bf16.gmra.mxu0 %v472
        %v605 = vpop.f32.mrf.mxu0
        %v606 = vadd.f32 0.0, %v605
        %v607 = vpop.f32.mrf.mxu0
        %v608 = vpop.f32.mrf.mxu0
        %v609 = vadd.f32 0.0, %v608
        %v610 = vpop.f32.mrf.mxu0
        %611 = vmatprep.mubr.bf16.mxu0 0
        %612 = vmatmul.mubr.bf16.gmra.mxu0 %v473
        %v613 = vpop.f32.mrf.mxu0
        %v614 = vadd.f32 0.0, %v613
        %v615 = vpop.f32.mrf.mxu0
        %v616 = vpop.f32.mrf.mxu0
        %v617 = vadd.f32 0.0, %v616
        %v618 = vpop.f32.mrf.mxu0
        %619 = vmatprep.mubr.bf16.mxu0 0
        %620 = vmatmul.mubr.bf16.gmra.mxu0 %v474
        %v621 = vpop.f32.mrf.mxu0
        %v622 = vadd.f32 0.0, %v621
        %v623 = vpop.f32.mrf.mxu0
        %v624 = vpop.f32.mrf.mxu0
        %v625 = vadd.f32 0.0, %v624
        %v626 = vpop.f32.mrf.mxu0
        %627 = vdwg.mxu0
        %v628 = vadd.f32 %v387, %v566
        %v629 = vadd.f32 %v388, %v569
        %v630 = vadd.f32 %v389, %v574
        %v631 = vadd.f32 %v390, %v577
        %v632 = vadd.f32 %v391, %v582
        %v633 = vadd.f32 %v392, %v585
        %v634 = vadd.f32 %v393, %v590
        %v635 = vadd.f32 %v394, %v593
        %v636 = vadd.f32 %v395, %v598
        %v637 = vadd.f32 %v396, %v601
        %v638 = vadd.f32 %v397, %v606
        %v639 = vadd.f32 %v398, %v609
        %v640 = vadd.f32 %v399, %v614
        %v641 = vadd.f32 %v400, %v617
        %v642 = vadd.f32 %v401, %v622
        %v643 = vadd.f32 %v402, %v625
        %644 = vst [vmem:[#allocation2] sm:$0xff] %v628
        %645 = vst [vmem:[#allocation2 + $0x8] sm:$0xff] %v629
        %646 = vst [vmem:[#allocation2 + $0x10] sm:$0xff] %v630
        %647 = vst [vmem:[#allocation2 + $0x18] sm:$0xff] %v631
        %648 = vst [vmem:[#allocation2 + $0x20] sm:$0xff] %v632
        %649 = vst [vmem:[#allocation2 + $0x28] sm:$0xff] %v633
        %650 = vst [vmem:[#allocation2 + $0x30] sm:$0xff] %v634
        %651 = vst [vmem:[#allocation2 + $0x38] sm:$0xff] %v635
        %652 = vst [vmem:[#allocation2 + $0x40] sm:$0xff] %v636
        %653 = vst [vmem:[#allocation2 + $0x48] sm:$0xff] %v637
        %654 = vst [vmem:[#allocation2 + $0x50] sm:$0xff] %v638
        %655 = vst [vmem:[#allocation2 + $0x58] sm:$0xff] %v639
        %656 = vst [vmem:[#allocation2 + $0x60] sm:$0xff] %v640
        %657 = vst [vmem:[#allocation2 + $0x68] sm:$0xff] %v641
        %658 = vst [vmem:[#allocation2 + $0x70] sm:$0xff] %v642
        %659 = vst [vmem:[#allocation2 + $0x78] sm:$0xff] %v643
        %p660 = scmp.eq.s32.totalorder %s27, 1
        // Predicated region
        $region82: #{tpu_custom_call.1} parent=68 // pred_check
          %p661 = pneg %p660
        $region83: #{tpu_custom_call.1} parent=68 // pred_check_branch
          %663 = sbr.rel (%p661) target = $region85
        $region84: #{tpu_custom_call.1} parent=68 // pred_region
          %v664 = vld [vmem:[#allocation2] sm:$0xff]
          %v665 = vld [vmem:[#allocation2 + $0x8] sm:$0xff]
          %v666 = vld [vmem:[#allocation2 + $0x10] sm:$0xff]
          %v667 = vld [vmem:[#allocation2 + $0x18] sm:$0xff]
          %v668 = vld [vmem:[#allocation2 + $0x20] sm:$0xff]
          %v669 = vld [vmem:[#allocation2 + $0x28] sm:$0xff]
          %v670 = vld [vmem:[#allocation2 + $0x30] sm:$0xff]
          %v671 = vld [vmem:[#allocation2 + $0x38] sm:$0xff]
          %v672 = vld [vmem:[#allocation2 + $0x40] sm:$0xff]
          %v673 = vld [vmem:[#allocation2 + $0x48] sm:$0xff]
          %v674 = vld [vmem:[#allocation2 + $0x50] sm:$0xff]
          %v675 = vld [vmem:[#allocation2 + $0x58] sm:$0xff]
          %v676 = vld [vmem:[#allocation2 + $0x60] sm:$0xff]
          %v677 = vld [vmem:[#allocation2 + $0x68] sm:$0xff]
          %v678 = vld [vmem:[#allocation2 + $0x70] sm:$0xff]
          %v679 = vld [vmem:[#allocation2 + $0x78] sm:$0xff]
          %v680 = vld [vmem:[%s363] sm:$0xff]
          %v681 = vld [vmem:[%s363 + $0x8] sm:$0xff]
          %v682 = vld [vmem:[%s363 + $0x10] sm:$0xff]
          %v683 = vld [vmem:[%s363 + $0x18] sm:$0xff]
          %v684 = vld [vmem:[%s363 + $0x20] sm:$0xff]
          %v685 = vld [vmem:[%s363 + $0x28] sm:$0xff]
          %v686 = vld [vmem:[%s363 + $0x30] sm:$0xff]
          %v687 = vld [vmem:[%s363 + $0x38] sm:$0xff]
          %v688 = vld [vmem:[%s363 + $0x40] sm:$0xff]
          %v689 = vld [vmem:[%s363 + $0x48] sm:$0xff]
          %v690 = vld [vmem:[%s363 + $0x50] sm:$0xff]
          %v691 = vld [vmem:[%s363 + $0x58] sm:$0xff]
          %v692 = vld [vmem:[%s363 + $0x60] sm:$0xff]
          %v693 = vld [vmem:[%s363 + $0x68] sm:$0xff]
          %v694 = vld [vmem:[%s363 + $0x70] sm:$0xff]
          %v695 = vld [vmem:[%s363 + $0x78] sm:$0xff]
          %697 = vset.pattern.permute.xlu0 0
          %698 = vperm.xlu0 %697, %v680
          %v699 = vpop.permute.xlu0 %698
          %702 = vset.pattern.permute.xlu0 0
          %703 = vperm.xlu0 %702, %v681
          %v704 = vpop.permute.xlu0 %703
          %707 = vset.pattern.permute.xlu0 0
          %708 = vperm.xlu0 %707, %v682
          %v709 = vpop.permute.xlu0 %708
          %712 = vset.pattern.permute.xlu0 0
          %713 = vperm.xlu0 %712, %v683
          %v714 = vpop.permute.xlu0 %713
          %717 = vset.pattern.permute.xlu0 0
          %718 = vperm.xlu0 %717, %v684
          %v719 = vpop.permute.xlu0 %718
          %722 = vset.pattern.permute.xlu0 0
          %723 = vperm.xlu0 %722, %v685
          %v724 = vpop.permute.xlu0 %723
          %727 = vset.pattern.permute.xlu0 0
          %728 = vperm.xlu0 %727, %v686
          %v729 = vpop.permute.xlu0 %728
          %732 = vset.pattern.permute.xlu0 0
          %733 = vperm.xlu0 %732, %v687
          %v734 = vpop.permute.xlu0 %733
          %737 = vset.pattern.permute.xlu0 0
          %738 = vperm.xlu0 %737, %v688
          %v739 = vpop.permute.xlu0 %738
          %742 = vset.pattern.permute.xlu0 0
          %743 = vperm.xlu0 %742, %v689
          %v744 = vpop.permute.xlu0 %743
          %747 = vset.pattern.permute.xlu0 0
          %748 = vperm.xlu0 %747, %v690
          %v749 = vpop.permute.xlu0 %748
          %752 = vset.pattern.permute.xlu0 0
          %753 = vperm.xlu0 %752, %v691
          %v754 = vpop.permute.xlu0 %753
          %757 = vset.pattern.permute.xlu0 0
          %758 = vperm.xlu0 %757, %v692
          %v759 = vpop.permute.xlu0 %758
          %762 = vset.pattern.permute.xlu0 0
          %763 = vperm.xlu0 %762, %v693
          %v764 = vpop.permute.xlu0 %763
          %767 = vset.pattern.permute.xlu0 0
          %768 = vperm.xlu0 %767, %v694
          %v769 = vpop.permute.xlu0 %768
          %772 = vset.pattern.permute.xlu0 0
          %773 = vperm.xlu0 %772, %v695
          %v774 = vpop.permute.xlu0 %773
          %v776 = vmul.f32 %v664, %v699
          %v777 = vmul.f32 %v665, %v704
          %v778 = vmul.f32 %v666, %v709
          %v779 = vmul.f32 %v667, %v714
          %v780 = vmul.f32 %v668, %v719
          %v781 = vmul.f32 %v669, %v724
          %v782 = vmul.f32 %v670, %v729
          %v783 = vmul.f32 %v671, %v734
          %v784 = vmul.f32 %v672, %v739
          %v785 = vmul.f32 %v673, %v744
          %v786 = vmul.f32 %v674, %v749
          %v787 = vmul.f32 %v675, %v754
          %v788 = vmul.f32 %v676, %v759
          %v789 = vmul.f32 %v677, %v764
          %v790 = vmul.f32 %v678, %v769
          %v791 = vmul.f32 %v679, %v774
          %792 = vst [vmem:[%s356] sm:$0xff] %v776
          %793 = vst [vmem:[%s356 + $0x8] sm:$0xff] %v777
          %794 = vst [vmem:[%s356 + $0x10] sm:$0xff] %v778
          %795 = vst [vmem:[%s356 + $0x18] sm:$0xff] %v779
          %796 = vst [vmem:[%s356 + $0x20] sm:$0xff] %v780
          %797 = vst [vmem:[%s356 + $0x28] sm:$0xff] %v781
          %798 = vst [vmem:[%s356 + $0x30] sm:$0xff] %v782
          %799 = vst [vmem:[%s356 + $0x38] sm:$0xff] %v783
          %800 = vst [vmem:[%s356 + $0x40] sm:$0xff] %v784
          %801 = vst [vmem:[%s356 + $0x48] sm:$0xff] %v785
          %802 = vst [vmem:[%s356 + $0x50] sm:$0xff] %v786
          %803 = vst [vmem:[%s356 + $0x58] sm:$0xff] %v787
          %804 = vst [vmem:[%s356 + $0x60] sm:$0xff] %v788
          %805 = vst [vmem:[%s356 + $0x68] sm:$0xff] %v789
          %806 = vst [vmem:[%s356 + $0x70] sm:$0xff] %v790
          %807 = vst [vmem:[%s356 + $0x78] sm:$0xff] %v791
        $region85: #{tpu_custom_call.1} parent=68 // pred_fallthru
          _
        %s808 = sand.u32 %s131, 1
        %s809 = scalar_lea.sflag [#allocation6], %s808
        %s810 = sand.u32 %s131, 1
        %s811 = smul.addr %s810, 128
        %s812 = scalar_lea.vmem [#allocation7], %s811
        // Predicated region
        $region86: #{tpu_custom_call.1} parent=68 // pred_check
          %p813 = pneg %p141
        $region87: #{tpu_custom_call.1} parent=68 // pred_check_branch
          %815 = sbr.rel (%p813) target = $region89
        $region88: #{tpu_custom_call.1} parent=68 // pred_region
          %s816 = smul.u32 16, %s25
          %s818 = ssub.s32 2048, 2048
          %819 = vsyncadd %s809, %s818
          %s820 = sadd.s32 %s26, %s816
          %s821 = smul.addr %s820, 128
          %s822 = scalar_lea.hbm %s3, %s821
          %s823 = sshll.u32 %s812, 4
          %s824 = int_to_ptr.vmem [resolvable:$true] %s823
          %829 = dma.vmem_to_hbm [thread:$0]  %s824, 2048, %s822, %s809, 128, 128, 8
        $region89: #{tpu_custom_call.1} parent=68 // pred_fallthru
          _
      $region69: #{tpu_custom_call.1} parent=5 // pred_fallthru
        _
      %p830 = scmp.le.s32.totalorder 2, %s15
      // Predicated region
      $region90: #{tpu_custom_call.1} parent=5 // pred_check
        %p831 = pneg %p830
      $region91: #{tpu_custom_call.1} parent=5 // pred_check_branch
        %833 = sbr.rel (%p831) target = $region93
      $region92: #{tpu_custom_call.1} parent=5 // pred_region
        %s834 = ssub.s32 %s15, 2
        // Predicated region
        $region94: #{tpu_custom_call.1} parent=92 // pred_check
          %p835 = pneg %p147
        $region95: #{tpu_custom_call.1} parent=92 // pred_check_branch
          %837 = sbr.rel (%p835) target = $region97
        $region96: #{tpu_custom_call.1} parent=92 // pred_region
          %s838 = sand.u32 %s132, 1
          %s839 = scalar_lea.sflag [#allocation6], %s838
          %s840 = sand.u32 %s132, 1
          %s841 = smul.addr %s840, 128
          %s842 = scalar_lea.vmem [#allocation7], %s841
          %843 = dma.done %s839, 2048
        $region97: #{tpu_custom_call.1} parent=92 // pred_fallthru
          _
      $region93: #{tpu_custom_call.1} parent=5 // pred_fallthru
        _
    $region6: #{tpu_custom_call.1} parent=1 // loop_footer
      %s19 = sadd.s32 1, %s15
    $region7: #{tpu_custom_call.1} parent=1 // loop_footer_branch
      %14 = sbr.rel target = $region3
    $region8: #{tpu_custom_call.1} parent=1 // loop_exit
      _
    %844 = vsyncpa [#allocation5], 1
    %s845 = scalar_lea.sflag [#allocation5], 1
    %846 = vsyncpa %s845, 1
    %847 = vsyncpa [#allocation6], 1
    %s848 = scalar_lea.sflag [#allocation6], 1
    %849 = vsyncpa %s848, 1

</llo_original>
